<compile_context>
chip_gen: v7x
topology: tpu7x:2x2x1
jax: 0.10.0
libtpu: 0.0.40
codegen_flags: <defaults>
</compile_context>

<pallas_src>
import jax
import jax.numpy as jnp
from jax.experimental import pallas as pl
from jax.experimental.pallas import tpu as pltpu


def _make_cin_kernel(m, d, b_tile, layer_sizes, compute_dtype):
    """Build the fused multi-layer CIN kernel (layer config is static)."""
    n_layers = len(layer_sizes)
    p = b_tile * d  # positions per grid step = batch_tile * embedding_dim

    def kernel(*refs):
        x_ref = refs[0]                       # (M, P)  first cross layer
        param_refs = refs[1:1 + 2 * n_layers]  # w0, b0, w1, b1, ...
        out_ref = refs[1 + 2 * n_layers]       # (C_total, B_TILE) summed outputs

        x0 = x_ref[...].astype(compute_dtype)  # (M, P)
        h = x0                                 # current cross layer
        row = 0
        for li, size in enumerate(layer_sizes):
            w = param_refs[2 * li][...].astype(compute_dtype)        # (size, M*H)
            bias = param_refs[2 * li + 1][...].astype(jnp.float32)   # (size, 1)
            hh = h.shape[0]

            # Feature crossing: z[i*H + j, :] = x0[i, :] * h[j, :]   (VPU)
            z = (x0[:, None, :] * h[None, :, :]).reshape(m * hh, p)

            # 1x1 conv == one MXU matmul, K = M*H, N = B_TILE*D; f32 accumulate.
            acc = jnp.dot(w, z, preferred_element_type=jnp.float32)  # (size, P)
            y = jnp.maximum(acc + bias, 0.0)

            if li == n_layers - 1:
                keep = y                                  # final hidden: all channels
            else:
                half = size // 2
                h = y[:half, :].astype(compute_dtype)     # h1 -> next cross layer (stays on-chip)
                keep = y[half:, :]                        # h2 -> contributes to output

            # Per-batch-element reduction over the embedding dim D.
            c = keep.shape[0]
            s = jnp.sum(keep.reshape(c, b_tile, d), axis=-1)          # (C, B_TILE)
            out_ref[row:row + c, :] = s.astype(out_ref.dtype)
            row += c

    return kernel


def _per_element_vmem_bytes(m, d, layer_sizes, compute_itemsize):
    """Rough per-batch-element live VMEM bytes inside the fused kernel."""
    h = m
    total = m * d * compute_itemsize           # x0 slab
    for size in layer_sizes:
        total += m * h * d * compute_itemsize  # crossed z
        total += size * d * 4                  # f32 conv output
        h = size // 2
    return total


def _pick_batch_tile(b, per_elem_bytes, budget_bytes=6 * 1024 * 1024, max_tile=512):
    """Largest batch tile fitting the VMEM budget (prefer lane-dense multiples of 128)."""
    cap = int(max(1, min(max_tile, budget_bytes // max(per_elem_bytes, 1))))
    if b <= cap:
        return b
    t = (cap // 128) * 128
    while t >= 128:                 # prefer a 128-multiple divisor (dense output stores)
        if b % t == 0:
            return t
        t -= 128
    for t in range(cap, 0, -1):     # fall back to the largest divisor that fits
        if b % t == 0:
            return t
    return 1


def cin_forward(x, weights, biases, cin_layer_size, *, compute_dtype=None):
    """Fused CIN forward. x: (B, M, D) float -> (B, C_total) float32."""
    b, m, d = x.shape
    n_layers = len(cin_layer_size)
    compute_dtype = jnp.dtype(jnp.float32 if compute_dtype is None else compute_dtype)

    c_total = sum(sz if i == n_layers - 1 else sz - sz // 2
                  for i, sz in enumerate(cin_layer_size))

    per_elem = _per_element_vmem_bytes(m, d, cin_layer_size, compute_dtype.itemsize)
    b_tile = _pick_batch_tile(b, per_elem)
    assert b % b_tile == 0
    grid = (b // b_tile,)

    # Wrapper-side layout plumbing: (B, M, D) -> (M, B*D) so batch*dim sits on
    # the lane axis inside the kernel (single matmul per layer, dense stores).
    xt = jnp.transpose(x, (1, 0, 2)).reshape(m, b * d).astype(compute_dtype)

    operands = [xt]
    in_specs = [pl.BlockSpec((m, b_tile * d), lambda i: (0, i))]
    flops = 0
    bytes_accessed = xt.size * xt.dtype.itemsize + c_total * b * 4
    h = m
    for wgt, bias, size in zip(weights, biases, cin_layer_size):
        k = m * h
        assert wgt.shape == (size, k), (wgt.shape, (size, k))
        w2 = wgt.astype(compute_dtype)
        b2 = bias.reshape(size, 1).astype(jnp.float32)
        operands += [w2, b2]
        in_specs += [pl.BlockSpec(w2.shape, lambda i: (0, 0)),
                     pl.BlockSpec(b2.shape, lambda i: (0, 0))]
        flops += 2 * size * k * b * d + 2 * k * b * d
        bytes_accessed += w2.size * w2.dtype.itemsize + b2.size * 4
        h = size // 2

    kernel = _make_cin_kernel(m, d, b_tile, tuple(cin_layer_size), compute_dtype)

    out_t = pl.pallas_call(
        kernel,
        out_shape=jax.ShapeDtypeStruct((c_total, b), jnp.float32),
        grid=grid,
        in_specs=in_specs,
        out_specs=pl.BlockSpec((c_total, b_tile), lambda i: (0, i)),
        compiler_params=pltpu.CompilerParams(
            dimension_semantics=("parallel",),
            vmem_limit_bytes=32 * 1024 * 1024),
        cost_estimate=pl.CostEstimate(
            flops=int(flops), transcendentals=0,
            bytes_accessed=int(bytes_accessed)),
    )(*operands)

    return out_t.T  # (B, C_total)


def cin_reference(x, weights, biases, cin_layer_size):
    """Plain-JAX reference mirroring the PyTorch module exactly."""
    b, m, d = x.shape
    cross_first, cross_last = x, x
    outs = []
    for i, size in enumerate(cin_layer_size):
        z = jnp.einsum('abc,adc->abdc', cross_first, cross_last).reshape(b, -1, d)
        y = jnp.einsum('oc,bcd->bod', weights[i], z) + biases[i][None, :, None]
        y = jnp.maximum(y, 0.0)
        if i == len(cin_layer_size) - 1:
            outs.append(y)
        else:
            half = size // 2
            cross_last = y[:, :half]
            outs.append(y[:, half:])
    return jnp.sum(jnp.concatenate(outs, axis=1), axis=-1)


if __name__ == "__main__":
    # Small, TPU-friendly shapes consistent with the module:
    #   batch=2, fields (init_size)=8, embedding dim=128, cin_layer_size=(16, 8)
    B, M, D = 2, 8, 128
    cin_layer_size = (16, 8)

    key = jax.random.PRNGKey(0)
    kx, kw0, kb0, kw1, kb1 = jax.random.split(key, 5)

    x = jax.random.normal(kx, (B, M, D), dtype=jnp.float32)

    # Conv1d(kernel_size=1) weights with the trailing kernel dim squeezed.
    weights = [
        0.1 * jax.random.normal(kw0, (cin_layer_size[0], M * M), jnp.float32),
        0.1 * jax.random.normal(
            kw1, (cin_layer_size[1], M * cin_layer_size[0] // 2), jnp.float32),
    ]
    biases = [
        0.1 * jax.random.normal(kb0, (cin_layer_size[0],), jnp.float32),
        0.1 * jax.random.normal(kb1, (cin_layer_size[1],), jnp.float32),
    ]

    out = jax.block_until_ready(cin_forward(x, weights, biases, cin_layer_size))
    ref = cin_reference(x, weights, biases, cin_layer_size)

    c_total = cin_layer_size[0] // 2 + cin_layer_size[1]
    assert out.shape == (B, c_total), out.shape
    assert jnp.allclose(out, ref, atol=1e-3, rtol=1e-3), (
        "Pallas CIN output mismatch vs reference")

    # Reduced-precision streaming path (halves HBM bytes on bf16-native chips);
    # verify it compiles/runs and produces sane output.
    out_bf16 = jax.block_until_ready(
        cin_forward(x, weights, biases, cin_layer_size, compute_dtype=jnp.bfloat16))
    assert out_bf16.shape == (B, c_total)
    assert bool(jnp.all(jnp.isfinite(out_bf16)))

    print("KERNEL_OK")
</pallas_src>

<mosaic_0001>
module attributes {stable_mosaic.version = 11 : i64} {
  func.func @kernel(%arg0: i32, %arg1: memref<8x256xf32, #tpu.memory_space<vmem>>, %arg2: memref<16x64xf32, #tpu.memory_space<vmem>>, %arg3: memref<16x1xf32, #tpu.memory_space<vmem>>, %arg4: memref<8x64xf32, #tpu.memory_space<vmem>>, %arg5: memref<8x1xf32, #tpu.memory_space<vmem>>, %arg6: memref<16x2xf32, #tpu.memory_space<vmem>>) attributes {dimension_semantics = [#tpu.dimension_semantics<parallel>], iteration_bounds = array<i64: 1>, scalar_prefetch = 0 : i64, scratch_operands = 0 : i64, tpu.core_type = #tpu.core_type<tc>, window_params = [{transform_indices = @transform_0, window_bounds = array<i64: 8, 256>}, {pipeline_mode = #tpu.pipeline_mode<synchronous>, transform_indices = @transform_1, window_bounds = array<i64: 16, 64>}, {pipeline_mode = #tpu.pipeline_mode<synchronous>, transform_indices = @transform_2, window_bounds = array<i64: 16, 1>}, {pipeline_mode = #tpu.pipeline_mode<synchronous>, transform_indices = @transform_3, window_bounds = array<i64: 8, 64>}, {pipeline_mode = #tpu.pipeline_mode<synchronous>, transform_indices = @transform_4, window_bounds = array<i64: 8, 1>}, {transform_indices = @transform_5, window_bounds = array<i64: 16, 2>}]} {
    %c0 = arith.constant 0 : index
    %c0_0 = arith.constant 0 : index
    %0 = vector.load %arg1[%c0, %c0_0] : memref<8x256xf32, #tpu.memory_space<vmem>>, vector<8x256xf32>
    %c0_1 = arith.constant 0 : index
    %c0_2 = arith.constant 0 : index
    %1 = vector.load %arg2[%c0_1, %c0_2] : memref<16x64xf32, #tpu.memory_space<vmem>>, vector<16x64xf32>
    %c0_3 = arith.constant 0 : index
    %c0_4 = arith.constant 0 : index
    %2 = vector.load %arg3[%c0_3, %c0_4] : memref<16x1xf32, #tpu.memory_space<vmem>>, vector<16x1xf32>
    %3 = vector.shape_cast %0 : vector<8x256xf32> to vector<8x1x256xf32>
    %4 = vector.shape_cast %0 : vector<8x256xf32> to vector<1x8x256xf32>
    %5 = vector.broadcast %3 : vector<8x1x256xf32> to vector<8x8x256xf32>
    %6 = vector.broadcast %4 : vector<1x8x256xf32> to vector<8x8x256xf32>
    %7 = arith.mulf %5, %6 : vector<8x8x256xf32>
    %8 = vector.shape_cast %7 : vector<8x8x256xf32> to vector<64x256xf32>
    %cst = arith.constant dense<0.000000e+00> : vector<16x256xf32>
    %9 = tpu.matmul %1, %8, %cst {dimension_numbers = #tpu.dot_dimension_numbers<[1], [0], [0], [1], [0, 0, 1, 1], [], []>} : vector<16x64xf32>, vector<64x256xf32>, vector<16x256xf32> -> vector<16x256xf32>
    %10 = vector.broadcast %2 : vector<16x1xf32> to vector<16x256xf32>
    %11 = arith.addf %9, %10 : vector<16x256xf32>
    %cst_5 = arith.constant 0.000000e+00 : f32
    %12 = vector.broadcast %cst_5 : f32 to vector<16x256xf32>
    %13 = arith.maximumf %11, %12 : vector<16x256xf32>
    %14 = vector.extract_strided_slice %13 {offsets = [0, 0], sizes = [8, 256], strides = [1, 1]} : vector<16x256xf32> to vector<8x256xf32>
    %15 = vector.extract_strided_slice %13 {offsets = [8, 0], sizes = [8, 256], strides = [1, 1]} : vector<16x256xf32> to vector<8x256xf32>
    %16 = vector.shape_cast %15 : vector<8x256xf32> to vector<8x2x128xf32>
    %cst_6 = arith.constant dense<0.000000e+00> : vector<8x2xf32>
    %17 = vector.multi_reduction <add>, %16, %cst_6 [2] : vector<8x2x128xf32> to vector<8x2xf32>
    %c0_7 = arith.constant 0 : index
    %c0_8 = arith.constant 0 : index
    %18 = vector.load %arg6[%c0_7, %c0_8] : memref<16x2xf32, #tpu.memory_space<vmem>>, vector<8x2xf32>
    tpu.vector_store %arg6[%c0_7, %c0_8], %17 {strides = array<i32>} : memref<16x2xf32, #tpu.memory_space<vmem>>, vector<8x2xf32>,
    %c0_9 = arith.constant 0 : index
    %c0_10 = arith.constant 0 : index
    %19 = vector.load %arg4[%c0_9, %c0_10] : memref<8x64xf32, #tpu.memory_space<vmem>>, vector<8x64xf32>
    %c0_11 = arith.constant 0 : index
    %c0_12 = arith.constant 0 : index
    %20 = vector.load %arg5[%c0_11, %c0_12] : memref<8x1xf32, #tpu.memory_space<vmem>>, vector<8x1xf32>
    %21 = vector.shape_cast %0 : vector<8x256xf32> to vector<8x1x256xf32>
    %22 = vector.shape_cast %14 : vector<8x256xf32> to vector<1x8x256xf32>
    %23 = vector.broadcast %21 : vector<8x1x256xf32> to vector<8x8x256xf32>
    %24 = vector.broadcast %22 : vector<1x8x256xf32> to vector<8x8x256xf32>
    %25 = arith.mulf %23, %24 : vector<8x8x256xf32>
    %26 = vector.shape_cast %25 : vector<8x8x256xf32> to vector<64x256xf32>
    %cst_13 = arith.constant dense<0.000000e+00> : vector<8x256xf32>
    %27 = tpu.matmul %19, %26, %cst_13 {dimension_numbers = #tpu.dot_dimension_numbers<[1], [0], [0], [1], [0, 0, 1, 1], [], []>} : vector<8x64xf32>, vector<64x256xf32>, vector<8x256xf32> -> vector<8x256xf32>
    %28 = vector.broadcast %20 : vector<8x1xf32> to vector<8x256xf32>
    %29 = arith.addf %27, %28 : vector<8x256xf32>
    %cst_14 = arith.constant 0.000000e+00 : f32
    %30 = vector.broadcast %cst_14 : f32 to vector<8x256xf32>
    %31 = arith.maximumf %29, %30 : vector<8x256xf32>
    %32 = vector.shape_cast %31 : vector<8x256xf32> to vector<8x2x128xf32>
    %cst_15 = arith.constant dense<0.000000e+00> : vector<8x2xf32>
    %33 = vector.multi_reduction <add>, %32, %cst_15 [2] : vector<8x2x128xf32> to vector<8x2xf32>
    %c8 = arith.constant 8 : index
    %c0_16 = arith.constant 0 : index
    %34 = vector.load %arg6[%c8, %c0_16] : memref<16x2xf32, #tpu.memory_space<vmem>>, vector<8x2xf32>
    tpu.vector_store %arg6[%c8, %c0_16], %33 {strides = array<i32>} : memref<16x2xf32, #tpu.memory_space<vmem>>, vector<8x2xf32>,
    return
  }
  func.func @transform_0(%arg0: i32) -> (i32, i32) {
    %c0_i32 = arith.constant 0 : i32
    %c0_i32_0 = arith.constant 0 : i32
    return %c0_i32, %arg0 : i32, i32
  }
  func.func @transform_1(%arg0: i32) -> (i32, i32) {
    %c0_i32 = arith.constant 0 : i32
    %c0_i32_0 = arith.constant 0 : i32
    %c0_i32_1 = arith.constant 0 : i32
    return %c0_i32, %c0_i32_0 : i32, i32
  }
  func.func @transform_2(%arg0: i32) -> (i32, i32) {
    %c0_i32 = arith.constant 0 : i32
    %c0_i32_0 = arith.constant 0 : i32
    %c0_i32_1 = arith.constant 0 : i32
    return %c0_i32, %c0_i32_0 : i32, i32
  }
  func.func @transform_3(%arg0: i32) -> (i32, i32) {
    %c0_i32 = arith.constant 0 : i32
    %c0_i32_0 = arith.constant 0 : i32
    %c0_i32_1 = arith.constant 0 : i32
    return %c0_i32, %c0_i32_0 : i32, i32
  }
  func.func @transform_4(%arg0: i32) -> (i32, i32) {
    %c0_i32 = arith.constant 0 : i32
    %c0_i32_0 = arith.constant 0 : i32
    %c0_i32_1 = arith.constant 0 : i32
    return %c0_i32, %c0_i32_0 : i32, i32
  }
  func.func @transform_5(%arg0: i32) -> (i32, i32) {
    %c0_i32 = arith.constant 0 : i32
    %c0_i32_0 = arith.constant 0 : i32
    return %c0_i32, %arg0 : i32, i32
  }
}

</mosaic_0001>

<llo_original>
// kernel: tpu_custom_call.1
$region0: #{tpu_custom_call.1}
  #allocation0 [shape = 'u32[]', space=smem, size = 0x4, offset = 0x4, fixed_abs, tag = 'smem constant byte address 0x4 - core index']
  #allocation1 [shape = 'u32[144,128]{1,0:T(1,128)}', space=vmem, size = 0x12000, scoped, tag = 'internal scratch']
  %s0 = inlined_call_operand.vmem [shape: f32[8,256], index: 0, kind: input, shape index: {}]
  %s1 = inlined_call_operand.hbm [shape: f32[16,64], index: 1, kind: input, shape index: {}]
  %s2 = inlined_call_operand.vmem [shape: f32[16,1], index: 2, kind: input, shape index: {}]
  %s3 = inlined_call_operand.vmem [shape: f32[8,64], index: 3, kind: input, shape index: {}]
  %s4 = inlined_call_operand.vmem [shape: f32[8,1], index: 4, kind: input, shape index: {}]
  %s5 = inlined_call_operand.vmem [shape: f32[16,2], index: 5, kind: output, shape index: {}]
  %s6 = sld [smem:[#allocation0]]
  $region34: #{tpu_custom_call.1} parent=0
    _
  %s8 = ssub.s32 1, %s6
  %s9 = scalar_select 0, %s8, %s6
  $region1: #{tpu_custom_call.1} parent=0
    #allocation2 [shape = 'u8[8192]{0}', space=vmem, size = 0x2000, scoped, tag = 'input window, operand 1, single buffered']
    #allocation3 [shape = 's32[1]{0}', space=sflag, size = 0x4, scoped, tag = 'scoped memory for tpu_custom_call.1']
    %10 = vsyncpa [#allocation3], 0
    // Predicated region
    $region2: #{tpu_custom_call.1} parent=1 // pred_check
      _
    $region3: #{tpu_custom_call.1} parent=1 // pred_check_branch
      %12 = sbr.rel (0) target = $region5
    $region4: #{tpu_custom_call.1} parent=1 // pred_region
      _
    $region5: #{tpu_custom_call.1} parent=1 // pred_fallthru
      _
    // Predicated region
    $region6: #{tpu_custom_call.1} parent=1 // pred_check
      _
    $region7: #{tpu_custom_call.1} parent=1 // pred_check_branch
      %14 = sbr.rel (0) target = $region9
    $region8: #{tpu_custom_call.1} parent=1 // pred_region
      %s16 = ssub.s32 256, 256
      %17 = vsyncadd [#allocation3], %s16
      %s18 = sshll.u32 [#allocation2], 4
      %s19 = int_to_ptr.vmem [resolvable:$true] %s18
      %24 = dma.hbm_to_vmem [thread:$0]  %s1, 256, %s19, [#allocation3], 128, 128, 8
    $region9: #{tpu_custom_call.1} parent=1 // pred_fallthru
      _
    // Predicated region
    $region10: #{tpu_custom_call.1} parent=1 // pred_check
      _
    $region11: #{tpu_custom_call.1} parent=1 // pred_check_branch
      %26 = sbr.rel (0) target = $region13
    $region12: #{tpu_custom_call.1} parent=1 // pred_region
      _
    $region13: #{tpu_custom_call.1} parent=1 // pred_fallthru
      _
    // Predicated region
    $region14: #{tpu_custom_call.1} parent=1 // pred_check
      _
    $region15: #{tpu_custom_call.1} parent=1 // pred_check_branch
      %28 = sbr.rel (0) target = $region17
    $region16: #{tpu_custom_call.1} parent=1 // pred_region
      _
    $region17: #{tpu_custom_call.1} parent=1 // pred_fallthru
      _
    // Predicated region
    $region18: #{tpu_custom_call.1} parent=1 // pred_check
      _
    $region19: #{tpu_custom_call.1} parent=1 // pred_check_branch
      %30 = sbr.rel (0) target = $region21
    $region20: #{tpu_custom_call.1} parent=1 // pred_region
      _
    $region21: #{tpu_custom_call.1} parent=1 // pred_fallthru
      _
    // Predicated region
    $region22: #{tpu_custom_call.1} parent=1 // pred_check
      _
    $region23: #{tpu_custom_call.1} parent=1 // pred_check_branch
      %32 = sbr.rel (0) target = $region25
    $region24: #{tpu_custom_call.1} parent=1 // pred_region
      %33 = dma.done [#allocation3], 256
    $region25: #{tpu_custom_call.1} parent=1 // pred_fallthru
      _
    %v34 = vld [vmem:[%s0] sm:$0xff]
    %v35 = vld [vmem:[%s0 + $0x8] sm:$0xff]
    %v36 = vld [vmem:[#allocation2] sm:$0xff]
    %v37 = vld [vmem:[#allocation2 + $0x8] sm:$0xff]
    %v38 = vld [vmem:[%s2] sm:$0xff]
    %v39 = vld [vmem:[%s2 + $0x8] sm:$0xff]
    %v42 = vcombine.low %v34, %v35
    %v43 = vcombine.high %v34, %v35
    %v45 = vunpack.c.l.s4 1966171168
    %v46 = vunpack.c.0.s8 %v45
    %v47 = vlaneseq
    %v48 = vshrl.u32 %v47, 7
    %v49 = vsub.s32 %v46, %v48
    %v50 = vrot.slane %v42, %v49
    %v52 = vunpack.c.l.s4 1966171168
    %v53 = vunpack.c.0.s8 %v52
    %v54 = vlaneseq
    %v55 = vshrl.u32 %v54, 7
    %v56 = vsub.s32 %v53, %v55
    %v57 = vrot.slane %v43, %v56
    %v58 = vcombine.high %v50, %v50
    %v59 = vcombine.high %v57, %v57
    %v61 = vunpack.c.l.s4 1966171168
    %v62 = vunpack.c.0.s8 %v61
    %v63 = vlaneseq
    %v64 = vshrl.u32 %v63, 7
    %v65 = vsub.s32 %v62, %v64
    %v66 = vrot.slane %v50, %v65
    %v68 = vunpack.c.l.s4 1966171168
    %v69 = vunpack.c.0.s8 %v68
    %v70 = vlaneseq
    %v71 = vshrl.u32 %v70, 7
    %v72 = vsub.s32 %v69, %v71
    %v73 = vrot.slane %v57, %v72
    %v75 = vunpack.c.l.s4 1966171168
    %v76 = vunpack.c.0.s8 %v75
    %v77 = vlaneseq
    %v78 = vshrl.u32 %v77, 7
    %v79 = vsub.s32 %v76, %v78
    %v80 = vrot.slane %v58, %v79
    %v82 = vunpack.c.l.s4 1966171168
    %v83 = vunpack.c.0.s8 %v82
    %v84 = vlaneseq
    %v85 = vshrl.u32 %v84, 7
    %v86 = vsub.s32 %v83, %v85
    %v87 = vrot.slane %v59, %v86
    %v88 = vcombine.high %v66, %v66
    %v89 = vcombine.high %v73, %v73
    %v90 = vcombine.high %v80, %v80
    %v91 = vcombine.high %v87, %v87
    %v92 = vlaneseq
    %v93 = vshrl.u32 %v92, 7
    %v94 = vsub.s32 0, %v93
    %v95 = vrot.slane %v66, %v94
    %v96 = vlaneseq
    %v97 = vshrl.u32 %v96, 7
    %v98 = vsub.s32 1, %v97
    %v99 = vrot.slane %v66, %v98
    %v100 = vlaneseq
    %v101 = vshrl.u32 %v100, 7
    %v102 = vsub.s32 0, %v101
    %v103 = vrot.slane %v80, %v102
    %v104 = vlaneseq
    %v105 = vshrl.u32 %v104, 7
    %v106 = vsub.s32 1, %v105
    %v107 = vrot.slane %v80, %v106
    %v108 = vlaneseq
    %v109 = vshrl.u32 %v108, 7
    %v110 = vsub.s32 0, %v109
    %v111 = vrot.slane %v88, %v110
    %v112 = vlaneseq
    %v113 = vshrl.u32 %v112, 7
    %v114 = vsub.s32 1, %v113
    %v115 = vrot.slane %v88, %v114
    %v116 = vlaneseq
    %v117 = vshrl.u32 %v116, 7
    %v118 = vsub.s32 0, %v117
    %v119 = vrot.slane %v90, %v118
    %v120 = vlaneseq
    %v121 = vshrl.u32 %v120, 7
    %v122 = vsub.s32 1, %v121
    %v123 = vrot.slane %v90, %v122
    %v124 = vlaneseq
    %v125 = vshrl.u32 %v124, 7
    %v126 = vsub.s32 0, %v125
    %v127 = vrot.slane %v73, %v126
    %v128 = vlaneseq
    %v129 = vshrl.u32 %v128, 7
    %v130 = vsub.s32 1, %v129
    %v131 = vrot.slane %v73, %v130
    %v132 = vlaneseq
    %v133 = vshrl.u32 %v132, 7
    %v134 = vsub.s32 0, %v133
    %v135 = vrot.slane %v87, %v134
    %v136 = vlaneseq
    %v137 = vshrl.u32 %v136, 7
    %v138 = vsub.s32 1, %v137
    %v139 = vrot.slane %v87, %v138
    %v140 = vlaneseq
    %v141 = vshrl.u32 %v140, 7
    %v142 = vsub.s32 0, %v141
    %v143 = vrot.slane %v89, %v142
    %v144 = vlaneseq
    %v145 = vshrl.u32 %v144, 7
    %v146 = vsub.s32 1, %v145
    %v147 = vrot.slane %v89, %v146
    %v148 = vlaneseq
    %v149 = vshrl.u32 %v148, 7
    %v150 = vsub.s32 0, %v149
    %v151 = vrot.slane %v91, %v150
    %v152 = vlaneseq
    %v153 = vshrl.u32 %v152, 7
    %v154 = vsub.s32 1, %v153
    %v155 = vrot.slane %v91, %v154
    %v172 = vmul.f32 %v95, %v34
    %v173 = vmul.f32 %v99, %v35
    %v174 = vmul.f32 %v103, %v34
    %v175 = vmul.f32 %v107, %v35
    %v176 = vmul.f32 %v111, %v34
    %v177 = vmul.f32 %v115, %v35
    %v178 = vmul.f32 %v119, %v34
    %v179 = vmul.f32 %v123, %v35
    %v180 = vmul.f32 %v127, %v34
    %v181 = vmul.f32 %v131, %v35
    %v182 = vmul.f32 %v135, %v34
    %v183 = vmul.f32 %v139, %v35
    %v184 = vmul.f32 %v143, %v34
    %v185 = vmul.f32 %v147, %v35
    %v186 = vmul.f32 %v151, %v34
    %v187 = vmul.f32 %v155, %v35
    %189 = vset.pattern.permute.xlu0 0
    %190 = vperm.xlu0 %189, %v38
    %v191 = vpop.permute.xlu0 %190
    %194 = vset.pattern.permute.xlu0 0
    %195 = vperm.xlu0 %194, %v39
    %v196 = vpop.permute.xlu0 %195
    %vm198 = vcmask 523264
    %v200 = vsel %vm198, %v36, 0
    %v203 = vsel %vm198, %v37, 0
    %205 = vmatprep.subr.mxu0 %v173
    %206 = vmatpush1.msra.mxu0 %v172
    %207 = vmatprep.subr.mxu0 %v175
    %208 = vmatpush1.msra.mxu0 %v174
    %209 = vmatprep.subr.mxu0 %v177
    %210 = vmatpush1.msra.mxu0 %v176
    %211 = vmatprep.subr.mxu0 %v179
    %212 = vmatpush1.msra.mxu0 %v178
    %213 = vmatprep.subr.mxu0 %v181
    %214 = vmatpush1.msra.mxu0 %v180
    %215 = vmatprep.subr.mxu0 %v183
    %216 = vmatpush1.msra.mxu0 %v182
    %217 = vmatprep.subr.mxu0 %v185
    %218 = vmatpush1.msra.mxu0 %v184
    %219 = vmatprep.subr.mxu0 %v187
    %220 = vmatpush1.msra.mxu0 %v186
    %221 = vmatprep.subr.mxu0 0.0
    %222 = vmatpush1.msra.mxu0 0.0
    %223 = vmatprep.subr.mxu0 0.0
    %224 = vmatpush1.msra.mxu0 0.0
    %225 = vmatprep.subr.mxu0 0.0
    %226 = vmatpush1.msra.mxu0 0.0
    %227 = vmatprep.subr.mxu0 0.0
    %228 = vmatpush1.msra.mxu0 0.0
    %229 = vmatprep.subr.mxu0 0.0
    %230 = vmatpush1.msra.mxu0 0.0
    %231 = vmatprep.subr.mxu0 0.0
    %232 = vmatpush1.msra.mxu0 0.0
    %233 = vmatprep.subr.mxu0 0.0
    %234 = vmatpush1.msra.mxu0 0.0
    %235 = vmatprep.subr.mxu0 0.0
    %236 = vmatpush1.msra.mxu0 0.0
    %237 = vmatprep.subr.mxu0 0.0
    %238 = vmatpush1.msra.mxu0 0.0
    %239 = vmatprep.subr.mxu0 0.0
    %240 = vmatpush1.msra.mxu0 0.0
    %241 = vmatprep.subr.mxu0 0.0
    %242 = vmatpush1.msra.mxu0 0.0
    %243 = vmatprep.subr.mxu0 0.0
    %244 = vmatpush1.msra.mxu0 0.0
    %245 = vmatprep.subr.mxu0 0.0
    %246 = vmatpush1.msra.mxu0 0.0
    %247 = vmatprep.subr.mxu0 0.0
    %248 = vmatpush1.msra.mxu0 0.0
    %249 = vmatprep.subr.mxu0 0.0
    %250 = vmatpush1.msra.mxu0 0.0
    %251 = vmatprep.subr.mxu0 0.0
    %252 = vmatpush1.msra.mxu0 0.0
    %253 = vmatprep.subr.mxu0 0.0
    %254 = vmatpush1.msra.mxu0 0.0
    %255 = vmatprep.subr.mxu0 0.0
    %256 = vmatpush1.msra.mxu0 0.0
    %257 = vmatprep.subr.mxu0 0.0
    %258 = vmatpush1.msra.mxu0 0.0
    %259 = vmatprep.subr.mxu0 0.0
    %260 = vmatpush1.msra.mxu0 0.0
    %261 = vmatprep.subr.mxu0 0.0
    %262 = vmatpush1.msra.mxu0 0.0
    %263 = vmatprep.subr.mxu0 0.0
    %264 = vmatpush1.msra.mxu0 0.0
    %265 = vmatprep.subr.mxu0 0.0
    %266 = vmatpush1.msra.mxu0 0.0
    %267 = vmatprep.subr.mxu0 0.0
    %268 = vmatpush1.msra.mxu0 0.0
    %269 = vmatprep.mubr.f32.mxu0 0.0
    %270 = vmatmul.mubr.f32.gmra.mrb[0].mxu0 %v200
    %v271 = vpop.f32.mrb[0].mxu0
    %v272 = vadd.f32 %v191, %v271
    %v273 = vpop.f32.mrb[0].mxu0
    %v274 = vadd.f32 %v191, %v273
    %275 = vmatprep.mubr.f32.mxu0 0.0
    %276 = vmatmul.mubr.f32.gmra.mrb[0].mxu0 %v203
    %v277 = vpop.f32.mrb[0].mxu0
    %v278 = vadd.f32 %v196, %v277
    %v279 = vpop.f32.mrb[0].mxu0
    %v280 = vadd.f32 %v196, %v279
    %281 = vdwg.mxu0
    %v282 = vmax.f32 %v272, 0.0
    %v283 = vmax.f32 %v274, 0.0
    %v284 = vmax.f32 %v278, 0.0
    %v285 = vmax.f32 %v280, 0.0
    %v286 = vcombine.high %v284, 0.0
    %v288 = vunpack.c.l.s4 1983009808
    %v289 = vunpack.c.0.s8 %v288
    %v290 = vlaneseq
    %v291 = vshrl.u32 %v290, 7
    %v292 = vsub.s32 %v289, %v291
    %v293 = vrot.slane %v284, %v292
    %v295 = vunpack.c.l.s4 1983009808
    %v296 = vunpack.c.0.s8 %v295
    %v297 = vlaneseq
    %v298 = vshrl.u32 %v297, 7
    %v299 = vsub.s32 %v296, %v298
    %v300 = vrot.slane %v286, %v299
    %v301 = vcombine.high %v285, 0.0
    %v303 = vunpack.c.l.s4 1983009808
    %v304 = vunpack.c.0.s8 %v303
    %v305 = vlaneseq
    %v306 = vshrl.u32 %v305, 7
    %v307 = vsub.s32 %v304, %v306
    %v308 = vrot.slane %v285, %v307
    %v310 = vunpack.c.l.s4 1983009808
    %v311 = vunpack.c.0.s8 %v310
    %v312 = vlaneseq
    %v313 = vshrl.u32 %v312, 7
    %v314 = vsub.s32 %v311, %v313
    %v315 = vrot.slane %v301, %v314
    %v316 = vcombine.low %v293, %v308
    %v317 = vcombine.high %v293, %v308
    %v319 = vunpack.c.l.s4 1934713408
    %v320 = vunpack.c.0.s8 %v319
    %v321 = vlaneseq
    %v322 = vshrl.u32 %v321, 7
    %v323 = vsub.s32 %v320, %v322
    %v324 = vrot.slane %v316, %v323
    %v326 = vunpack.c.l.s4 1934713408
    %v327 = vunpack.c.0.s8 %v326
    %v328 = vlaneseq
    %v329 = vshrl.u32 %v328, 7
    %v330 = vsub.s32 %v327, %v329
    %v331 = vrot.slane %v317, %v330
    %v332 = vcombine.low %v300, %v315
    %v333 = vcombine.high %v300, %v315
    %v335 = vunpack.c.l.s4 1934713408
    %v336 = vunpack.c.0.s8 %v335
    %v337 = vlaneseq
    %v338 = vshrl.u32 %v337, 7
    %v339 = vsub.s32 %v336, %v338
    %v340 = vrot.slane %v332, %v339
    %v342 = vunpack.c.l.s4 1934713408
    %v343 = vunpack.c.0.s8 %v342
    %v344 = vlaneseq
    %v345 = vshrl.u32 %v344, 7
    %v346 = vsub.s32 %v343, %v345
    %v347 = vrot.slane %v333, %v346
    %v348 = vcombine.high %v324, 0.0
    %v349 = vcombine.high %v331, 0.0
    %v350 = vcombine.high %v340, 0.0
    %v351 = vcombine.high %v347, 0.0
    %vm352 = vcmask 1041408
    %v353 = vsel %vm352, %v324, 0.0
    %354 = vadd.xlane.f32.xlu0 %v353
    %v355 = vpop.xlane.xlu0 %354
    %v356 = vsel %vm352, %v348, 0.0
    %357 = vadd.xlane.f32.xlu0 %v356
    %v358 = vpop.xlane.xlu0 %357
    %v359 = vsel %vm352, %v331, 0.0
    %360 = vadd.xlane.f32.xlu0 %v359
    %v361 = vpop.xlane.xlu0 %360
    %v362 = vsel %vm352, %v349, 0.0
    %363 = vadd.xlane.f32.xlu0 %v362
    %v364 = vpop.xlane.xlu0 %363
    %v365 = vsel %vm352, %v340, 0.0
    %366 = vadd.xlane.f32.xlu0 %v365
    %v367 = vpop.xlane.xlu0 %366
    %v368 = vsel %vm352, %v350, 0.0
    %369 = vadd.xlane.f32.xlu0 %v368
    %v370 = vpop.xlane.xlu0 %369
    %v371 = vsel %vm352, %v347, 0.0
    %372 = vadd.xlane.f32.xlu0 %v371
    %v373 = vpop.xlane.xlu0 %372
    %v374 = vsel %vm352, %v351, 0.0
    %375 = vadd.xlane.f32.xlu0 %v374
    %v376 = vpop.xlane.xlu0 %375
    %v385 = vlaneseq
    %v386 = vand.u32 %v385, 127
    %v387 = vlaneseq
    %v388 = vshrl.u32 %v387, 7
    %v389 = vsub.s32 %v386, %v388
    %v390 = vrot.slane %v355, %v389
    %v391 = vlaneseq
    %v392 = vshrl.u32 %v391, 7
    %v393 = vsub.s32 %v386, %v392
    %v394 = vrot.slane %v358, %v393
    %v395 = vlaneseq
    %v396 = vshrl.u32 %v395, 7
    %v397 = vsub.s32 %v386, %v396
    %v398 = vrot.slane %v361, %v397
    %v399 = vlaneseq
    %v400 = vshrl.u32 %v399, 7
    %v401 = vsub.s32 %v386, %v400
    %v402 = vrot.slane %v364, %v401
    %v403 = vlaneseq
    %v404 = vshrl.u32 %v403, 7
    %v405 = vsub.s32 %v386, %v404
    %v406 = vrot.slane %v367, %v405
    %v407 = vlaneseq
    %v408 = vshrl.u32 %v407, 7
    %v409 = vsub.s32 %v386, %v408
    %v410 = vrot.slane %v370, %v409
    %v411 = vlaneseq
    %v412 = vshrl.u32 %v411, 7
    %v413 = vsub.s32 %v386, %v412
    %v414 = vrot.slane %v373, %v413
    %v415 = vlaneseq
    %v416 = vshrl.u32 %v415, 7
    %v417 = vsub.s32 %v386, %v416
    %v418 = vrot.slane %v376, %v417
    %vm419 = vcmask 1041409
    %v420 = vsel %vm419, %v394, %v390
    %vm421 = vcmask 1042434
    %v422 = vsel %vm421, %v398, %v420
    %vm423 = vcmask 1043459
    %v424 = vsel %vm423, %v402, %v422
    %vm425 = vcmask 1044484
    %v426 = vsel %vm425, %v406, %v424
    %vm427 = vcmask 1045509
    %v428 = vsel %vm427, %v410, %v426
    %vm429 = vcmask 1046534
    %v430 = vsel %vm429, %v414, %v428
    %vm431 = vcmask 1047559
    %v432 = vsel %vm431, %v418, %v430
    %vm434 = vcmask 15360
    %435 = vst.msk [vmem:[%s5] sm:$0xff] %vm434, %v432
    %v436 = vld [vmem:[%s3] sm:$0xff]
    %v437 = vld [vmem:[%s4] sm:$0xff]
    %v438 = vmul.f32 %v95, %v282
    %v439 = vmul.f32 %v99, %v283
    %v440 = vmul.f32 %v103, %v282
    %v441 = vmul.f32 %v107, %v283
    %v442 = vmul.f32 %v111, %v282
    %v443 = vmul.f32 %v115, %v283
    %v444 = vmul.f32 %v119, %v282
    %v445 = vmul.f32 %v123, %v283
    %v446 = vmul.f32 %v127, %v282
    %v447 = vmul.f32 %v131, %v283
    %v448 = vmul.f32 %v135, %v282
    %v449 = vmul.f32 %v139, %v283
    %v450 = vmul.f32 %v143, %v282
    %v451 = vmul.f32 %v147, %v283
    %v452 = vmul.f32 %v151, %v282
    %v453 = vmul.f32 %v155, %v283
    %455 = vset.pattern.permute.xlu0 0
    %456 = vperm.xlu0 %455, %v437
    %v457 = vpop.permute.xlu0 %456
    %v460 = vsel %vm198, %v436, 0
    %462 = vmatprep.subr.mxu0 %v439
    %463 = vmatpush1.msra.mxu0 %v438
    %464 = vmatprep.subr.mxu0 %v441
    %465 = vmatpush1.msra.mxu0 %v440
    %466 = vmatprep.subr.mxu0 %v443
    %467 = vmatpush1.msra.mxu0 %v442
    %468 = vmatprep.subr.mxu0 %v445
    %469 = vmatpush1.msra.mxu0 %v444
    %470 = vmatprep.subr.mxu0 %v447
    %471 = vmatpush1.msra.mxu0 %v446
    %472 = vmatprep.subr.mxu0 %v449
    %473 = vmatpush1.msra.mxu0 %v448
    %474 = vmatprep.subr.mxu0 %v451
    %475 = vmatpush1.msra.mxu0 %v450
    %476 = vmatprep.subr.mxu0 %v453
    %477 = vmatpush1.msra.mxu0 %v452
    %478 = vmatprep.subr.mxu0 0.0
    %479 = vmatpush1.msra.mxu0 0.0
    %480 = vmatprep.subr.mxu0 0.0
    %481 = vmatpush1.msra.mxu0 0.0
    %482 = vmatprep.subr.mxu0 0.0
    %483 = vmatpush1.msra.mxu0 0.0
    %484 = vmatprep.subr.mxu0 0.0
    %485 = vmatpush1.msra.mxu0 0.0
    %486 = vmatprep.subr.mxu0 0.0
    %487 = vmatpush1.msra.mxu0 0.0
    %488 = vmatprep.subr.mxu0 0.0
    %489 = vmatpush1.msra.mxu0 0.0
    %490 = vmatprep.subr.mxu0 0.0
    %491 = vmatpush1.msra.mxu0 0.0
    %492 = vmatprep.subr.mxu0 0.0
    %493 = vmatpush1.msra.mxu0 0.0
    %494 = vmatprep.subr.mxu0 0.0
    %495 = vmatpush1.msra.mxu0 0.0
    %496 = vmatprep.subr.mxu0 0.0
    %497 = vmatpush1.msra.mxu0 0.0
    %498 = vmatprep.subr.mxu0 0.0
    %499 = vmatpush1.msra.mxu0 0.0
    %500 = vmatprep.subr.mxu0 0.0
    %501 = vmatpush1.msra.mxu0 0.0
    %502 = vmatprep.subr.mxu0 0.0
    %503 = vmatpush1.msra.mxu0 0.0
    %504 = vmatprep.subr.mxu0 0.0
    %505 = vmatpush1.msra.mxu0 0.0
    %506 = vmatprep.subr.mxu0 0.0
    %507 = vmatpush1.msra.mxu0 0.0
    %508 = vmatprep.subr.mxu0 0.0
    %509 = vmatpush1.msra.mxu0 0.0
    %510 = vmatprep.subr.mxu0 0.0
    %511 = vmatpush1.msra.mxu0 0.0
    %512 = vmatprep.subr.mxu0 0.0
    %513 = vmatpush1.msra.mxu0 0.0
    %514 = vmatprep.subr.mxu0 0.0
    %515 = vmatpush1.msra.mxu0 0.0
    %516 = vmatprep.subr.mxu0 0.0
    %517 = vmatpush1.msra.mxu0 0.0
    %518 = vmatprep.subr.mxu0 0.0
    %519 = vmatpush1.msra.mxu0 0.0
    %520 = vmatprep.subr.mxu0 0.0
    %521 = vmatpush1.msra.mxu0 0.0
    %522 = vmatprep.subr.mxu0 0.0
    %523 = vmatpush1.msra.mxu0 0.0
    %524 = vmatprep.subr.mxu0 0.0
    %525 = vmatpush1.msra.mxu0 0.0
    %526 = vmatprep.mubr.f32.mxu0 0.0
    %527 = vmatmul.mubr.f32.gmra.mrb[0].mxu0 %v460
    %v528 = vpop.f32.mrb[0].mxu0
    %v529 = vadd.f32 %v457, %v528
    %v530 = vpop.f32.mrb[0].mxu0
    %v531 = vadd.f32 %v457, %v530
    %532 = vdwg.mxu0
    %v533 = vmax.f32 %v529, 0.0
    %v534 = vmax.f32 %v531, 0.0
    %v535 = vcombine.high %v533, 0.0
    %v537 = vunpack.c.l.s4 1983009808
    %v538 = vunpack.c.0.s8 %v537
    %v539 = vlaneseq
    %v540 = vshrl.u32 %v539, 7
    %v541 = vsub.s32 %v538, %v540
    %v542 = vrot.slane %v533, %v541
    %v544 = vunpack.c.l.s4 1983009808
    %v545 = vunpack.c.0.s8 %v544
    %v546 = vlaneseq
    %v547 = vshrl.u32 %v546, 7
    %v548 = vsub.s32 %v545, %v547
    %v549 = vrot.slane %v535, %v548
    %v550 = vcombine.high %v534, 0.0
    %v552 = vunpack.c.l.s4 1983009808
    %v553 = vunpack.c.0.s8 %v552
    %v554 = vlaneseq
    %v555 = vshrl.u32 %v554, 7
    %v556 = vsub.s32 %v553, %v555
    %v557 = vrot.slane %v534, %v556
    %v559 = vunpack.c.l.s4 1983009808
    %v560 = vunpack.c.0.s8 %v559
    %v561 = vlaneseq
    %v562 = vshrl.u32 %v561, 7
    %v563 = vsub.s32 %v560, %v562
    %v564 = vrot.slane %v550, %v563
    %v565 = vcombine.low %v542, %v557
    %v566 = vcombine.high %v542, %v557
    %v568 = vunpack.c.l.s4 1934713408
    %v569 = vunpack.c.0.s8 %v568
    %v570 = vlaneseq
    %v571 = vshrl.u32 %v570, 7
    %v572 = vsub.s32 %v569, %v571
    %v573 = vrot.slane %v565, %v572
    %v575 = vunpack.c.l.s4 1934713408
    %v576 = vunpack.c.0.s8 %v575
    %v577 = vlaneseq
    %v578 = vshrl.u32 %v577, 7
    %v579 = vsub.s32 %v576, %v578
    %v580 = vrot.slane %v566, %v579
    %v581 = vcombine.low %v549, %v564
    %v582 = vcombine.high %v549, %v564
    %v584 = vunpack.c.l.s4 1934713408
    %v585 = vunpack.c.0.s8 %v584
    %v586 = vlaneseq
    %v587 = vshrl.u32 %v586, 7
    %v588 = vsub.s32 %v585, %v587
    %v589 = vrot.slane %v581, %v588
    %v591 = vunpack.c.l.s4 1934713408
    %v592 = vunpack.c.0.s8 %v591
    %v593 = vlaneseq
    %v594 = vshrl.u32 %v593, 7
    %v595 = vsub.s32 %v592, %v594
    %v596 = vrot.slane %v582, %v595
    %v597 = vcombine.high %v573, 0.0
    %v598 = vcombine.high %v580, 0.0
    %v599 = vcombine.high %v589, 0.0
    %v600 = vcombine.high %v596, 0.0
    %v601 = vsel %vm352, %v573, 0.0
    %602 = vadd.xlane.f32.xlu0 %v601
    %v603 = vpop.xlane.xlu0 %602
    %v604 = vsel %vm352, %v597, 0.0
    %605 = vadd.xlane.f32.xlu0 %v604
    %v606 = vpop.xlane.xlu0 %605
    %v607 = vsel %vm352, %v580, 0.0
    %608 = vadd.xlane.f32.xlu0 %v607
    %v609 = vpop.xlane.xlu0 %608
    %v610 = vsel %vm352, %v598, 0.0
    %611 = vadd.xlane.f32.xlu0 %v610
    %v612 = vpop.xlane.xlu0 %611
    %v613 = vsel %vm352, %v589, 0.0
    %614 = vadd.xlane.f32.xlu0 %v613
    %v615 = vpop.xlane.xlu0 %614
    %v616 = vsel %vm352, %v599, 0.0
    %617 = vadd.xlane.f32.xlu0 %v616
    %v618 = vpop.xlane.xlu0 %617
    %v619 = vsel %vm352, %v596, 0.0
    %620 = vadd.xlane.f32.xlu0 %v619
    %v621 = vpop.xlane.xlu0 %620
    %v622 = vsel %vm352, %v600, 0.0
    %623 = vadd.xlane.f32.xlu0 %v622
    %v624 = vpop.xlane.xlu0 %623
    %v633 = vlaneseq
    %v634 = vshrl.u32 %v633, 7
    %v635 = vsub.s32 %v386, %v634
    %v636 = vrot.slane %v603, %v635
    %v637 = vlaneseq
    %v638 = vshrl.u32 %v637, 7
    %v639 = vsub.s32 %v386, %v638
    %v640 = vrot.slane %v606, %v639
    %v641 = vlaneseq
    %v642 = vshrl.u32 %v641, 7
    %v643 = vsub.s32 %v386, %v642
    %v644 = vrot.slane %v609, %v643
    %v645 = vlaneseq
    %v646 = vshrl.u32 %v645, 7
    %v647 = vsub.s32 %v386, %v646
    %v648 = vrot.slane %v612, %v647
    %v649 = vlaneseq
    %v650 = vshrl.u32 %v649, 7
    %v651 = vsub.s32 %v386, %v650
    %v652 = vrot.slane %v615, %v651
    %v653 = vlaneseq
    %v654 = vshrl.u32 %v653, 7
    %v655 = vsub.s32 %v386, %v654
    %v656 = vrot.slane %v618, %v655
    %v657 = vlaneseq
    %v658 = vshrl.u32 %v657, 7
    %v659 = vsub.s32 %v386, %v658
    %v660 = vrot.slane %v621, %v659
    %v661 = vlaneseq
    %v662 = vshrl.u32 %v661, 7
    %v663 = vsub.s32 %v386, %v662
    %v664 = vrot.slane %v624, %v663
    %v665 = vsel %vm419, %v640, %v636
    %v666 = vsel %vm421, %v644, %v665
    %v667 = vsel %vm423, %v648, %v666
    %v668 = vsel %vm425, %v652, %v667
    %v669 = vsel %vm427, %v656, %v668
    %v670 = vsel %vm429, %v660, %v669
    %v671 = vsel %vm431, %v664, %v670
    %673 = vst.msk [vmem:[%s5 + $0x8] sm:$0xff] %vm434, %v671
    // Predicated region
    $region26: #{tpu_custom_call.1} parent=1 // pred_check
      _
    $region27: #{tpu_custom_call.1} parent=1 // pred_check_branch
      %675 = sbr.rel (0) target = $region29
    $region28: #{tpu_custom_call.1} parent=1 // pred_region
      _
    $region29: #{tpu_custom_call.1} parent=1 // pred_fallthru
      _
    // Predicated region
    $region30: #{tpu_custom_call.1} parent=1 // pred_check
      _
    $region31: #{tpu_custom_call.1} parent=1 // pred_check_branch
      %677 = sbr.rel (0) target = $region33
    $region32: #{tpu_custom_call.1} parent=1 // pred_region
      _
    $region33: #{tpu_custom_call.1} parent=1 // pred_fallthru
      _
    %678 = vsyncpa [#allocation3], 1

</llo_original>
